<compile_context>
chip_gen: v7x
topology: tpu7x:2x2x1
jax: 0.10.0
libtpu: 0.0.40
codegen_flags: <defaults>
</compile_context>

<pallas_src>
import functools

import jax
import jax.numpy as jnp
from jax import lax
from jax.experimental import pallas as pl
from jax.experimental.pallas import tpu as pltpu


@functools.lru_cache(maxsize=None)
def _vmem_limit_bytes():
    """Per-generation scoped-VMEM limit: ~75% of physical, capped at 112 MiB.
    Falls back to 48 MiB (safe on every generation incl. v7x's 64 MiB)."""
    try:
        cap = int(pltpu.get_tpu_info().vmem_capacity_bytes)
        return min((cap * 3) // 4, 112 * 1024 * 1024)
    except Exception:
        return 48 * 1024 * 1024


def _pick_block(dim, target, multiple):
    """Largest block <= target that divides `dim` and is a multiple of
    `multiple`; falls back to the full dimension (always a legal block)."""
    if dim <= target:
        return dim
    best = 0
    c = multiple
    while c <= target:
        if dim % c == 0:
            best = c
        c += multiple
    return best if best else dim


# ---------------------------------------------------------------------------
# Kernel 1: GPT-2 Conv1D  (y = x @ W + b)
# ---------------------------------------------------------------------------
def _matmul_bias_kernel(x_ref, w_ref, b_ref, o_ref):
    # Full-K path: no accumulator revisit, output tile written exactly once.
    acc = jnp.dot(x_ref[...], w_ref[...], preferred_element_type=jnp.float32)
    o_ref[...] = (acc + b_ref[...].astype(jnp.float32)).astype(o_ref.dtype)


def _matmul_bias_acc_kernel(x_ref, w_ref, b_ref, o_ref, acc_ref):
    k = pl.program_id(2)

    @pl.when(k == 0)
    def _():
        acc_ref[...] = jnp.zeros_like(acc_ref)

    acc_ref[...] += jnp.dot(x_ref[...], w_ref[...],
                            preferred_element_type=jnp.float32)

    @pl.when(k == pl.num_programs(2) - 1)
    def _():
        o_ref[...] = (acc_ref[...] + b_ref[...].astype(jnp.float32)).astype(o_ref.dtype)


def conv1d(x2d, w, b, *, tm_target=512, tn_target=1024):
    """x2d: [M, K], w: [K, N], b: [N] -> [M, N]."""
    M, K = x2d.shape
    N = w.shape[1]
    budget = _vmem_limit_bytes()
    itemsize = jnp.dtype(x2d.dtype).itemsize

    tm = _pick_block(M, tm_target, 8)       # sublane dim: multiple of 8 or full
    tn = _pick_block(N, tn_target, 128)     # lane dim: multiple of 128 or full
    b2d = b.reshape(1, N)

    def footprint(tk_):
        fp = 2 * (tm * tk_ + tk_ * tn + tn) * itemsize   # double-buffered inputs
        fp += 2 * tm * tn * itemsize                      # double-buffered output
        fp += tm * tn * 4                                  # f32 result / accumulator
        return fp

    if footprint(K) <= int(budget * 0.85):
        # Preferred path for GPT-2 sizes: no K grid axis at all.
        return pl.pallas_call(
            _matmul_bias_kernel,
            out_shape=jax.ShapeDtypeStruct((M, N), x2d.dtype),
            grid_spec=pltpu.PrefetchScalarGridSpec(
                num_scalar_prefetch=0,
                grid=(M // tm, N // tn),
                in_specs=[
                    pl.BlockSpec((tm, K), lambda i, j: (i, 0)),
                    pl.BlockSpec((K, tn), lambda i, j: (0, j)),
                    pl.BlockSpec((1, tn), lambda i, j: (0, j)),
                ],
                out_specs=pl.BlockSpec((tm, tn), lambda i, j: (i, j)),
            ),
            compiler_params=pltpu.CompilerParams(
                dimension_semantics=("parallel", "parallel"),
                vmem_limit_bytes=budget,
            ),
        )(x2d, w, b2d)

    # Fallback for very large K: tiled K axis with an f32 accumulator.
    tk = _pick_block(K, 1024, 256)
    if tk == K:
        tk = _pick_block(K, 512, 128)
    return pl.pallas_call(
        _matmul_bias_acc_kernel,
        out_shape=jax.ShapeDtypeStruct((M, N), x2d.dtype),
        grid_spec=pltpu.PrefetchScalarGridSpec(
            num_scalar_prefetch=0,
            grid=(M // tm, N // tn, K // tk),
            in_specs=[
                pl.BlockSpec((tm, tk), lambda i, j, k: (i, k)),
                pl.BlockSpec((tk, tn), lambda i, j, k: (k, j)),
                pl.BlockSpec((1, tn), lambda i, j, k: (0, j)),
            ],
            out_specs=pl.BlockSpec((tm, tn), lambda i, j, k: (i, j)),
            scratch_shapes=[pltpu.VMEM((tm, tn), jnp.float32)],
        ),
        compiler_params=pltpu.CompilerParams(
            dimension_semantics=("parallel", "parallel", "arbitrary"),
            vmem_limit_bytes=budget,
        ),
    )(x2d, w, b2d)


# ---------------------------------------------------------------------------
# Kernel 2: fused causal multi-head attention (flash-style, online softmax)
# ---------------------------------------------------------------------------
def _flash_attn_kernel(q_ref, k_ref, v_ref, o_ref, m_ref, l_ref, acc_ref, *,
                       num_heads, head_dim, masked_bias, block_q, block_k):
    qi = pl.program_id(1)
    ki = pl.program_id(2)

    @pl.when(ki == 0)
    def _init():
        m_ref[...] = jnp.full_like(m_ref, -jnp.inf)
        l_ref[...] = jnp.zeros_like(l_ref)
        acc_ref[...] = jnp.zeros_like(acc_ref)

    # Causal tile skip: kv tiles strictly above the diagonal contribute nothing
    # (their DMA is also elided by the clamped index_map below).
    @pl.when(ki <= qi)
    def _compute():
        # Head-independent causal mask, built once per tile.
        q_pos = qi * block_q + lax.broadcasted_iota(jnp.int32, (block_q, block_k), 0)
        k_pos = ki * block_k + lax.broadcasted_iota(jnp.int32, (block_q, block_k), 1)
        causal = k_pos <= q_pos
        neg = jnp.float32(masked_bias)

        # Static per-head Ref slices: only (block, head_dim) is live at a time.
        for h in range(num_heads):
            sl = slice(h * head_dim, (h + 1) * head_dim)
            q_h = q_ref[0, :, sl]            # (bq, hd)  (scale already folded in)
            k_h = k_ref[0, :, sl]            # (bk, hd)
            v_h = v_ref[0, :, sl]            # (bk, hd)

            # q @ k^T contracting last dims -> no transposed copy of k.
            s = lax.dot_general(q_h, k_h, (((1,), (1,)), ((), ())),
                                preferred_element_type=jnp.float32)   # (bq, bk)
            s = jnp.where(causal, s, neg)

            m_prev = m_ref[h]                                         # (bq, 1)
            m_new = jnp.maximum(m_prev, jnp.max(s, axis=-1, keepdims=True))
            alpha = jnp.exp(m_prev - m_new)
            p = jnp.exp(s - m_new)
            l_ref[h] = alpha * l_ref[h] + jnp.sum(p, axis=-1, keepdims=True)
            pv = jnp.dot(p.astype(v_h.dtype), v_h,
                         preferred_element_type=jnp.float32)
            acc_ref[:, sl] = alpha * acc_ref[:, sl] + pv
            m_ref[h] = m_new

    # Finalize on the last *computed* kv tile for this q tile (the diagonal).
    @pl.when(ki == qi)
    def _finalize():
        for h in range(num_heads):
            sl = slice(h * head_dim, (h + 1) * head_dim)
            inv = 1.0 / l_ref[h]             # exact; runs once per q tile
            acc_ref[:, sl] = acc_ref[:, sl] * inv
        # Single lane-dense (bq, E) store of the whole normalized block.
        o_ref[0] = acc_ref[...].astype(o_ref.dtype)


def fused_causal_attention(q, k, v, *, num_heads, head_dim,
                           masked_bias=-10000.0, block_target=256):
    """q, k, v: [B, S, E] with head h at columns [h*hd, (h+1)*hd).
    Returns merged-heads attention output [B, S, E]."""
    B, S, E = q.shape
    assert E == num_heads * head_dim
    blk = _pick_block(S, block_target, 128)
    if blk == S and S > 512:
        blk = _pick_block(S, block_target, 8)
    nblk = S // blk

    kern = functools.partial(
        _flash_attn_kernel,
        num_heads=num_heads, head_dim=head_dim,
        masked_bias=masked_bias, block_q=blk, block_k=blk)

    return pl.pallas_call(
        kern,
        out_shape=jax.ShapeDtypeStruct((B, S, E), q.dtype),
        grid_spec=pltpu.PrefetchScalarGridSpec(
            num_scalar_prefetch=0,
            grid=(B, nblk, nblk),
            in_specs=[
                pl.BlockSpec((1, blk, E), lambda b, qi, ki: (b, qi, 0)),
                # Clamp to the diagonal: skipped tiles repeat the previous
                # block index, so their K/V DMA is elided by the pipeline.
                pl.BlockSpec((1, blk, E), lambda b, qi, ki: (b, jnp.minimum(ki, qi), 0)),
                pl.BlockSpec((1, blk, E), lambda b, qi, ki: (b, jnp.minimum(ki, qi), 0)),
            ],
            out_specs=pl.BlockSpec((1, blk, E), lambda b, qi, ki: (b, qi, 0)),
            scratch_shapes=[
                pltpu.VMEM((num_heads, blk, 1), jnp.float32),   # running max m
                pltpu.VMEM((num_heads, blk, 1), jnp.float32),   # running sum l
                pltpu.VMEM((blk, E), jnp.float32),              # output accumulator
            ],
        ),
        compiler_params=pltpu.CompilerParams(
            dimension_semantics=("parallel", "parallel", "arbitrary"),
            vmem_limit_bytes=_vmem_limit_bytes(),
        ),
    )(q, k, v)


# ---------------------------------------------------------------------------
# GPT2Attention forward (glue in plain JAX, hot paths in Pallas)
# ---------------------------------------------------------------------------
def gpt2_attention_forward(hidden_states, params, *, num_heads,
                           scale_attn_weights=True,
                           scale_attn_by_inverse_layer_idx=False,
                           layer_idx=None):
    B, S, E = hidden_states.shape
    assert E % num_heads == 0
    hd = E // num_heads

    scale = 1.0
    if scale_attn_weights:
        scale /= float(hd) ** 0.5
    if scale_attn_by_inverse_layer_idx:
        scale /= float(layer_idx + 1)

    # Module layout: c_attn column  c = 3*hd*h + part*hd + d  (part: 0=q,1=k,2=v).
    # Repack (zero-copy reshape/slice of the weights, done once per call) into
    # Q | K | V slabs with heads contiguous, and fold the softmax scale into Q.
    w3 = params["c_attn_w"].reshape(E, num_heads, 3, hd)
    b3 = params["c_attn_b"].reshape(num_heads, 3, hd)
    w_q = (w3[:, :, 0, :] * scale).reshape(E, E)
    b_q = (b3[:, 0, :] * scale).reshape(E)
    w_k = w3[:, :, 1, :].reshape(E, E)
    b_k = b3[:, 1, :].reshape(E)
    w_v = w3[:, :, 2, :].reshape(E, E)
    b_v = b3[:, 2, :].reshape(E)

    x2d = hidden_states.reshape(B * S, E)
    q = conv1d(x2d, w_q, b_q).reshape(B, S, E)
    k = conv1d(x2d, w_k, b_k).reshape(B, S, E)
    v = conv1d(x2d, w_v, b_v).reshape(B, S, E)

    # Attention writes the merged-heads [B, S, E] layout directly.
    attn_out = fused_causal_attention(q, k, v, num_heads=num_heads, head_dim=hd)

    out = conv1d(attn_out.reshape(B * S, E), params["c_proj_w"], params["c_proj_b"])
    return out.reshape(B, S, E)


# ---------------------------------------------------------------------------
# Pure-JAX reference (mirrors the PyTorch forward) for correctness checks
# ---------------------------------------------------------------------------
def reference_forward(hidden_states, params, *, num_heads,
                      scale_attn_weights=True,
                      scale_attn_by_inverse_layer_idx=False, layer_idx=None):
    B, S, E = hidden_states.shape
    hd = E // num_heads
    prec = lax.Precision.HIGHEST
    qkv = jnp.dot(hidden_states, params["c_attn_w"], precision=prec) + params["c_attn_b"]
    qkv = qkv.reshape(B, S, num_heads, 3 * hd).transpose(0, 2, 1, 3)
    q, k, v = jnp.split(qkv, 3, axis=3)
    s = jnp.einsum("bhqd,bhkd->bhqk", q, k, precision=prec)
    if scale_attn_weights:
        s = s / jnp.float32(hd) ** 0.5
    if scale_attn_by_inverse_layer_idx:
        s = s / float(layer_idx + 1)
    mask = jnp.tril(jnp.ones((S, S), dtype=bool))
    s = jnp.where(mask, s, jnp.float32(-10000.0))
    p = jax.nn.softmax(s, axis=-1)
    o = jnp.einsum("bhqk,bhkd->bhqd", p, v, precision=prec)
    o = o.transpose(0, 2, 1, 3).reshape(B, S, E)
    return jnp.dot(o, params["c_proj_w"], precision=prec) + params["c_proj_b"]


if __name__ == "__main__":
    def run_case(B, S, E, H, key):
        k_x, k_wa, k_ba, k_wp, k_bp = jax.random.split(key, 5)
        hidden_states = jax.random.normal(k_x, (B, S, E), dtype=jnp.float32)
        params = {
            "c_attn_w": 0.02 * jax.random.normal(k_wa, (E, 3 * E), dtype=jnp.float32),
            "c_attn_b": 0.10 * jax.random.normal(k_ba, (3 * E,), dtype=jnp.float32),
            "c_proj_w": 0.02 * jax.random.normal(k_wp, (E, E), dtype=jnp.float32),
            "c_proj_b": 0.10 * jax.random.normal(k_bp, (E,), dtype=jnp.float32),
        }
        out = gpt2_attention_forward(
            hidden_states, params, num_heads=H,
            scale_attn_weights=True,
            scale_attn_by_inverse_layer_idx=False,
            layer_idx=0,
        )
        out = jax.block_until_ready(out)
        ref = reference_forward(hidden_states, params, num_heads=H)
        assert out.shape == (B, S, E)
        err = float(jnp.max(jnp.abs(out - ref)))
        assert jnp.allclose(out, ref, atol=5e-3, rtol=5e-3), (
            f"mismatch vs reference at (B={B},S={S},E={E},H={H}): max abs err {err}")

    key = jax.random.PRNGKey(0)
    key_small, key_big = jax.random.split(key)
    # Small single-block shapes (the required tiny smoke test).
    run_case(2, 8, 32, 4, key_small)
    # Multi-block shapes: exercises conv1d M-tiling, causal kv-tile skipping,
    # the clamped kv index_map, and head_dim=64 (GPT-2-like) head slices.
    run_case(2, 512, 256, 4, key_big)

    print("KERNEL_OK")
</pallas_src>

<mosaic_0001>
module attributes {stable_mosaic.version = 11 : i64} {
  func.func @_matmul_bias_kernel(%arg0: i32, %arg1: i32, %arg2: memref<16x32xf32, #tpu.memory_space<vmem>>, %arg3: memref<32x32xf32, #tpu.memory_space<vmem>>, %arg4: memref<1x32xf32, #tpu.memory_space<vmem>>, %arg5: memref<16x32xf32, #tpu.memory_space<vmem>>) attributes {dimension_semantics = [#tpu.dimension_semantics<parallel>, #tpu.dimension_semantics<parallel>], iteration_bounds = array<i64: 1, 1>, scalar_prefetch = 0 : i64, scratch_operands = 0 : i64, tpu.core_type = #tpu.core_type<tc>, window_params = [{transform_indices = @transform_0, window_bounds = array<i64: 16, 32>}, {transform_indices = @transform_1, window_bounds = array<i64: 32, 32>}, {transform_indices = @transform_2, window_bounds = array<i64: 1, 32>}, {transform_indices = @transform_3, window_bounds = array<i64: 16, 32>}]} {
    %c0 = arith.constant 0 : index
    %c0_0 = arith.constant 0 : index
    %0 = vector.load %arg2[%c0, %c0_0] : memref<16x32xf32, #tpu.memory_space<vmem>>, vector<16x32xf32>
    %c0_1 = arith.constant 0 : index
    %c0_2 = arith.constant 0 : index
    %1 = vector.load %arg3[%c0_1, %c0_2] : memref<32x32xf32, #tpu.memory_space<vmem>>, vector<32x32xf32>
    %cst = arith.constant dense<0.000000e+00> : vector<16x32xf32>
    %2 = tpu.matmul %0, %1, %cst {dimension_numbers = #tpu.dot_dimension_numbers<[1], [0], [0], [1], [0, 0, 1, 1], [], []>} : vector<16x32xf32>, vector<32x32xf32>, vector<16x32xf32> -> vector<16x32xf32>
    %c0_3 = arith.constant 0 : index
    %c0_4 = arith.constant 0 : index
    %3 = vector.load %arg4[%c0_3, %c0_4] : memref<1x32xf32, #tpu.memory_space<vmem>>, vector<1x32xf32>
    %4 = vector.broadcast %3 : vector<1x32xf32> to vector<16x32xf32>
    %5 = arith.addf %2, %4 : vector<16x32xf32>
    %c0_5 = arith.constant 0 : index
    %c0_6 = arith.constant 0 : index
    %6 = vector.load %arg5[%c0_5, %c0_6] : memref<16x32xf32, #tpu.memory_space<vmem>>, vector<16x32xf32>
    tpu.vector_store %arg5[%c0_5, %c0_6], %5 {strides = array<i32>} : memref<16x32xf32, #tpu.memory_space<vmem>>, vector<16x32xf32>,
    return
  }
  func.func @transform_0(%arg0: i32, %arg1: i32) -> (i32, i32) {
    %c0_i32 = arith.constant 0 : i32
    %c0_i32_0 = arith.constant 0 : i32
    return %arg0, %c0_i32 : i32, i32
  }
  func.func @transform_1(%arg0: i32, %arg1: i32) -> (i32, i32) {
    %c0_i32 = arith.constant 0 : i32
    %c0_i32_0 = arith.constant 0 : i32
    return %c0_i32, %arg1 : i32, i32
  }
  func.func @transform_2(%arg0: i32, %arg1: i32) -> (i32, i32) {
    %c0_i32 = arith.constant 0 : i32
    %c0_i32_0 = arith.constant 0 : i32
    return %c0_i32, %arg1 : i32, i32
  }
  func.func @transform_3(%arg0: i32, %arg1: i32) -> (i32, i32) {
    %c0_i32 = arith.constant 0 : i32
    return %arg0, %arg1 : i32, i32
  }
}

</mosaic_0001>

<llo_original>
// kernel: tpu_custom_call.1
$region0: #{tpu_custom_call.1}
  #allocation0 [shape = 'u32[]', space=smem, size = 0x4, offset = 0x4, fixed_abs, tag = 'smem constant byte address 0x4 - core index']
  #allocation1 [shape = 'u32[144,128]{1,0:T(1,128)}', space=vmem, size = 0x12000, scoped, tag = 'internal scratch']
  %s0 = inlined_call_operand.hbm [shape: f32[16,32], index: 0, kind: input, shape index: {}]
  %s1 = inlined_call_operand.hbm [shape: f32[32,32], index: 1, kind: input, shape index: {}]
  %s2 = inlined_call_operand.vmem [shape: f32[1,32], index: 2, kind: input, shape index: {}]
  %s3 = inlined_call_operand.hbm [shape: f32[16,32], index: 3, kind: output, shape index: {}]
  %s4 = sld [smem:[#allocation0]]
  $region30: #{tpu_custom_call.1} parent=0
    _
  %s6 = ssub.s32 1, %s4
  %s7 = scalar_select 0, %s6, %s4
  $region1: #{tpu_custom_call.1} parent=0
    #allocation2 [shape = 'u8[8192]{0}', space=vmem, size = 0x2000, scoped, tag = 'input window, operand 0, single buffered']
    #allocation3 [shape = 's32[1]{0}', space=sflag, size = 0x4, scoped, tag = 'scoped memory for tpu_custom_call.1']
    #allocation4 [shape = 's32[1]{0}', space=sflag, size = 0x4, scoped, tag = 'scoped memory for tpu_custom_call.1']
    #allocation5 [shape = 'u8[16384]{0}', space=vmem, size = 0x4000, scoped, tag = 'input window, operand 1, single buffered']
    #allocation6 [shape = 's32[1]{0}', space=sflag, size = 0x4, scoped, tag = 'scoped memory for tpu_custom_call.1']
    #allocation7 [shape = 'u8[8192]{0}', space=vmem, size = 0x2000, scoped, tag = 'output window, operand 0, single buffered']
    %8 = vsyncpa [#allocation3], 0
    %9 = vsyncpa [#allocation6], 0
    %10 = vsyncpa [#allocation4], 0
    // Predicated region
    $region2: #{tpu_custom_call.1} parent=1 // pred_check
      _
    $region3: #{tpu_custom_call.1} parent=1 // pred_check_branch
      %12 = sbr.rel (0) target = $region5
    $region4: #{tpu_custom_call.1} parent=1 // pred_region
      %s14 = ssub.s32 256, 256
      %15 = vsyncadd [#allocation3], %s14
      %s16 = sshll.u32 [#allocation2], 4
      %s17 = int_to_ptr.vmem [resolvable:$true] %s16
      %22 = dma.hbm_to_vmem [thread:$0]  %s0, 256, %s17, [#allocation3], 128, 128, 8
    $region5: #{tpu_custom_call.1} parent=1 // pred_fallthru
      _
    // Predicated region
    $region6: #{tpu_custom_call.1} parent=1 // pred_check
      _
    $region7: #{tpu_custom_call.1} parent=1 // pred_check_branch
      %24 = sbr.rel (0) target = $region9
    $region8: #{tpu_custom_call.1} parent=1 // pred_region
      %s26 = ssub.s32 512, 512
      %27 = vsyncadd [#allocation6], %s26
      %s28 = sshll.u32 [#allocation5], 4
      %s29 = int_to_ptr.vmem [resolvable:$true] %s28
      %34 = dma.hbm_to_vmem [thread:$0]  %s1, 512, %s29, [#allocation6], 128, 128, 8
    $region9: #{tpu_custom_call.1} parent=1 // pred_fallthru
      _
    // Predicated region
    $region10: #{tpu_custom_call.1} parent=1 // pred_check
      _
    $region11: #{tpu_custom_call.1} parent=1 // pred_check_branch
      %36 = sbr.rel (0) target = $region13
    $region12: #{tpu_custom_call.1} parent=1 // pred_region
      _
    $region13: #{tpu_custom_call.1} parent=1 // pred_fallthru
      _
    // Predicated region
    $region14: #{tpu_custom_call.1} parent=1 // pred_check
      _
    $region15: #{tpu_custom_call.1} parent=1 // pred_check_branch
      %38 = sbr.rel (0) target = $region17
    $region16: #{tpu_custom_call.1} parent=1 // pred_region
      %39 = dma.done [#allocation3], 256
    $region17: #{tpu_custom_call.1} parent=1 // pred_fallthru
      _
    // Predicated region
    $region18: #{tpu_custom_call.1} parent=1 // pred_check
      _
    $region19: #{tpu_custom_call.1} parent=1 // pred_check_branch
      %41 = sbr.rel (0) target = $region21
    $region20: #{tpu_custom_call.1} parent=1 // pred_region
      %42 = dma.done [#allocation6], 512
    $region21: #{tpu_custom_call.1} parent=1 // pred_fallthru
      _
    %v43 = vld [vmem:[#allocation2] sm:$0xff]
    %v44 = vld [vmem:[#allocation2 + $0x8] sm:$0xff]
    %v45 = vld [vmem:[#allocation5] sm:$0xff]
    %v46 = vld [vmem:[#allocation5 + $0x8] sm:$0xff]
    %v47 = vld [vmem:[#allocation5 + $0x10] sm:$0xff]
    %v48 = vld [vmem:[#allocation5 + $0x18] sm:$0xff]
    %v49 = vld [vmem:[%s2] sm:$0x1]
    %v51 = vlaneseq
    %v52 = vshrl.u32 %v51, 7
    %v53 = vsub.s32 0, %v52
    %v54 = vrot.slane %v49, %v53
    %vm56 = vcmask 261120
    %v58 = vsel %vm56, %v43, 0
    %v61 = vsel %vm56, %v44, 0
    %63 = vmatprep.subr.mxu0 0.0
    %64 = vmatpush1.msra.mxu0 %v45
    %65 = vmatprep.subr.mxu0 0.0
    %66 = vmatpush1.msra.mxu0 %v46
    %67 = vmatprep.subr.mxu0 0.0
    %68 = vmatpush1.msra.mxu0 %v47
    %69 = vmatprep.subr.mxu0 0.0
    %70 = vmatpush1.msra.mxu0 %v48
    %71 = vmatprep.subr.mxu0 0.0
    %72 = vmatpush1.msra.mxu0 0.0
    %73 = vmatprep.subr.mxu0 0.0
    %74 = vmatpush1.msra.mxu0 0.0
    %75 = vmatprep.subr.mxu0 0.0
    %76 = vmatpush1.msra.mxu0 0.0
    %77 = vmatprep.subr.mxu0 0.0
    %78 = vmatpush1.msra.mxu0 0.0
    %79 = vmatprep.subr.mxu0 0.0
    %80 = vmatpush1.msra.mxu0 0.0
    %81 = vmatprep.subr.mxu0 0.0
    %82 = vmatpush1.msra.mxu0 0.0
    %83 = vmatprep.subr.mxu0 0.0
    %84 = vmatpush1.msra.mxu0 0.0
    %85 = vmatprep.subr.mxu0 0.0
    %86 = vmatpush1.msra.mxu0 0.0
    %87 = vmatprep.subr.mxu0 0.0
    %88 = vmatpush1.msra.mxu0 0.0
    %89 = vmatprep.subr.mxu0 0.0
    %90 = vmatpush1.msra.mxu0 0.0
    %91 = vmatprep.subr.mxu0 0.0
    %92 = vmatpush1.msra.mxu0 0.0
    %93 = vmatprep.subr.mxu0 0.0
    %94 = vmatpush1.msra.mxu0 0.0
    %95 = vmatprep.subr.mxu0 0.0
    %96 = vmatpush1.msra.mxu0 0.0
    %97 = vmatprep.subr.mxu0 0.0
    %98 = vmatpush1.msra.mxu0 0.0
    %99 = vmatprep.subr.mxu0 0.0
    %100 = vmatpush1.msra.mxu0 0.0
    %101 = vmatprep.subr.mxu0 0.0
    %102 = vmatpush1.msra.mxu0 0.0
    %103 = vmatprep.subr.mxu0 0.0
    %104 = vmatpush1.msra.mxu0 0.0
    %105 = vmatprep.subr.mxu0 0.0
    %106 = vmatpush1.msra.mxu0 0.0
    %107 = vmatprep.subr.mxu0 0.0
    %108 = vmatpush1.msra.mxu0 0.0
    %109 = vmatprep.subr.mxu0 0.0
    %110 = vmatpush1.msra.mxu0 0.0
    %111 = vmatprep.subr.mxu0 0.0
    %112 = vmatpush1.msra.mxu0 0.0
    %113 = vmatprep.subr.mxu0 0.0
    %114 = vmatpush1.msra.mxu0 0.0
    %115 = vmatprep.subr.mxu0 0.0
    %116 = vmatpush1.msra.mxu0 0.0
    %117 = vmatprep.subr.mxu0 0.0
    %118 = vmatpush1.msra.mxu0 0.0
    %119 = vmatprep.subr.mxu0 0.0
    %120 = vmatpush1.msra.mxu0 0.0
    %121 = vmatprep.subr.mxu0 0.0
    %122 = vmatpush1.msra.mxu0 0.0
    %123 = vmatprep.subr.mxu0 0.0
    %124 = vmatpush1.msra.mxu0 0.0
    %125 = vmatprep.subr.mxu0 0.0
    %126 = vmatpush1.msra.mxu0 0.0
    %127 = vmatprep.mubr.f32.mxu0 0.0
    %128 = vmatmul.mubr.f32.gmra.mrb[0].mxu0 %v58
    %v129 = vpop.f32.mrb[0].mxu0
    %v130 = vadd.f32 %v54, %v129
    %v131 = vpop.f32.mrb[0].mxu0
    %132 = vmatprep.mubr.f32.mxu0 0.0
    %133 = vmatmul.mubr.f32.gmra.mrb[0].mxu0 %v61
    %v134 = vpop.f32.mrb[0].mxu0
    %v135 = vadd.f32 %v54, %v134
    %v136 = vpop.f32.mrb[0].mxu0
    %137 = vdwg.mxu0
    %138 = vst.msk [vmem:[#allocation7] sm:$0xff] %vm56, %v130
    %139 = vst.msk [vmem:[#allocation7 + $0x8] sm:$0xff] %vm56, %v135
    // Predicated region
    $region22: #{tpu_custom_call.1} parent=1 // pred_check
      _
    $region23: #{tpu_custom_call.1} parent=1 // pred_check_branch
      %141 = sbr.rel (0) target = $region25
    $region24: #{tpu_custom_call.1} parent=1 // pred_region
      %s143 = ssub.s32 256, 256
      %144 = vsyncadd [#allocation4], %s143
      %s145 = sshll.u32 [#allocation7], 4
      %s146 = int_to_ptr.vmem [resolvable:$true] %s145
      %151 = dma.vmem_to_hbm [thread:$0]  %s146, 256, %s3, [#allocation4], 128, 128, 8
    $region25: #{tpu_custom_call.1} parent=1 // pred_fallthru
      _
    // Predicated region
    $region26: #{tpu_custom_call.1} parent=1 // pred_check
      _
    $region27: #{tpu_custom_call.1} parent=1 // pred_check_branch
      %153 = sbr.rel (0) target = $region29
    $region28: #{tpu_custom_call.1} parent=1 // pred_region
      %154 = dma.done [#allocation4], 256
    $region29: #{tpu_custom_call.1} parent=1 // pred_fallthru
      _
    %155 = vsyncpa [#allocation3], 1
    %156 = vsyncpa [#allocation6], 1
    %157 = vsyncpa [#allocation4], 1

</llo_original>
